<compile_context>
chip_gen: v7x
topology: tpu7x:2x2x1
jax: 0.10.0
libtpu: 0.0.40
codegen_flags: <defaults>
</compile_context>

<pallas_src>
import functools

import jax
import jax.numpy as jnp
from jax import lax
from jax.experimental import pallas as pl
from jax.experimental.pallas import tpu as pltpu


def _round_up(x, m):
    return (x + m - 1) // m * m


# ---------------------------------------------------------------------------
# Pallas kernel: per batch-tile  conv(GEMM, bias folded) -> ReLU -> avg-pool
#                -> LeakyReLU -> Linear(GEMM)
# ---------------------------------------------------------------------------
def visual_embedding_kernel(patches_ref, wconv_ref, wlin_ref, blin_ref, out_ref,
                            *, tb, feat, chunk_rows, n_chunks, inv_p):
    # patches_ref : (TB*P, KCp) bf16  position-major im2col rows (row = pos*TB + img);
    #               one column is 1.0 (bias column), remaining columns zero-padded.
    # wconv_ref   : (KCp, FEAT) bf16  flattened conv weight with the conv bias as one row.
    # wlin_ref    : (FEAT, OUTp) f32  linear weight (transposed), output cols zero-padded.
    # blin_ref    : (1, OUTp)   f32   (padded cols are zero)
    # out_ref     : (TB, OUTp)  f32   lane-dense output block
    pos_per_chunk = chunk_rows // tb

    def body(c, pooled_sum):
        r0 = pl.multiple_of(c * chunk_rows, chunk_rows)
        # conv as an MXU GEMM chunk (bf16 in, f32 accumulate); bias rides inside the GEMM.
        fm = jnp.dot(patches_ref[pl.ds(r0, chunk_rows), :], wconv_ref[...],
                     preferred_element_type=jnp.float32)
        fm = jnp.maximum(fm, 0.0)                                   # ReLU
        # rows are (position, image) ordered: reducing over positions = cheap vreg adds.
        return pooled_sum + jnp.sum(fm.reshape(pos_per_chunk, tb, feat), axis=0)

    pooled = lax.fori_loop(0, n_chunks, body,
                           jnp.zeros((tb, feat), jnp.float32), unroll=True) * inv_p

    # LeakyReLU (PyTorch default negative_slope = 0.01), kept in f32
    act = jnp.where(pooled > 0, pooled, 0.01 * pooled)

    # final Linear: small (TB, FEAT) @ (FEAT, OUTp) GEMM kept fully in f32 for parity
    y = jnp.dot(act, wlin_ref[...], preferred_element_type=jnp.float32) + blin_ref[...]
    out_ref[...] = y.astype(out_ref.dtype)


# ---------------------------------------------------------------------------
# Wrapper: bf16 im2col + bias folding + padding glue + pallas_call
# ---------------------------------------------------------------------------
def visual_embedding(x_nchw, w_conv, b_conv, w_lin, b_lin, *, stride=2, pad=1, tb=8):
    N, C_in, H, W = x_nchw.shape
    FEAT, _, K, _ = w_conv.shape          # (FEAT, C_in, K, K) -- PyTorch conv layout
    OUT = w_lin.shape[0]                  # (OUT, FEAT)        -- PyTorch linear layout

    H_out = (H + 2 * pad - K) // stride + 1
    W_out = (W + 2 * pad - K) // stride + 1
    P = H_out * W_out
    KC = K * K * C_in
    KCb = KC + 1                          # + bias column (conv bias folded into the GEMM)
    KCp = _round_up(KCb, 32)              # small contraction padding (NOT 128): 4x less DMA
    OUTp = _round_up(OUT, 128)            # lane-dense output -> unmasked stores

    TB = max(8, _round_up(min(tb, N), 8))   # keep the (TB, OUTp) f32 out tile (8,128)-legal
    N_pad = _round_up(N, TB)
    n_steps = N_pad // TB

    # ---- wrapper-side im2col, built directly in bf16 (layout plumbing only) ----
    x = x_nchw.astype(jnp.bfloat16)
    if N_pad != N:
        x = jnp.pad(x, ((0, N_pad - N), (0, 0), (0, 0), (0, 0)))
    xh = jnp.transpose(x, (0, 2, 3, 1))                       # NCHW -> NHWC
    xh = jnp.pad(xh, ((0, 0), (pad, pad), (pad, pad), (0, 0)))
    cols = []
    for kh in range(K):
        for kw in range(K):
            cols.append(xh[:, kh:kh + stride * H_out:stride,
                              kw:kw + stride * W_out:stride, :])   # (Np, Ho, Wo, Cin)
    patches = jnp.concatenate(cols, axis=-1).reshape(N_pad, P, KC)
    ones = jnp.ones((N_pad, P, 1), jnp.bfloat16)              # bias column
    patches = jnp.concatenate([patches, ones], axis=-1)
    patches = jnp.pad(patches, ((0, 0), (0, 0), (0, KCp - KCb)))
    # position-major within each batch tile: row = pos*TB + img, so the in-kernel pool over
    # positions becomes plain vreg adds on an (TB, FEAT) accumulator.
    patches = patches.reshape(n_steps, TB, P, KCp).transpose(0, 2, 1, 3)
    patches = patches.reshape(n_steps * P * TB, KCp)

    # conv weight flattened in (kh, kw, cin) order to match the patch columns;
    # conv bias folded in as one extra row; zero-pad remaining rows.
    w_conv_flat = jnp.transpose(w_conv, (2, 3, 1, 0)).reshape(KC, FEAT)
    w_conv_flat = jnp.concatenate([w_conv_flat, b_conv.reshape(1, FEAT)], axis=0)
    w_conv_flat = jnp.pad(w_conv_flat, ((0, KCp - KCb), (0, 0))).astype(jnp.bfloat16)

    # linear weight transposed for x @ W; zero-pad output columns (and bias); kept f32.
    w_lin_t = jnp.pad(jnp.transpose(w_lin, (1, 0)),
                      ((0, 0), (0, OUTp - OUT))).astype(jnp.float32)
    b_lin_row = jnp.pad(b_lin.reshape(1, OUT),
                        ((0, 0), (0, OUTp - OUT))).astype(jnp.float32)

    # chunk the conv GEMM over ~128 patch rows (whole position groups) to keep the
    # ReLU/pool live set in vregs instead of a spilled (TB*P, FEAT) f32 slab.
    pos_per_chunk = max(1, min(P, 128 // TB))
    while P % pos_per_chunk != 0:
        pos_per_chunk -= 1
    chunk_rows = pos_per_chunk * TB
    n_chunks = (P * TB) // chunk_rows

    kernel = functools.partial(visual_embedding_kernel, tb=TB, feat=FEAT,
                               chunk_rows=chunk_rows, n_chunks=n_chunks, inv_p=1.0 / P)

    out = pl.pallas_call(
        kernel,
        out_shape=jax.ShapeDtypeStruct((N_pad, OUTp), jnp.float32),
        grid_spec=pl.GridSpec(
            grid=(n_steps,),
            in_specs=[
                pl.BlockSpec((TB * P, KCp), lambda i: (i, 0)),   # per-step patch slab
                pl.BlockSpec((KCp, FEAT), lambda i: (0, 0)),     # grid-invariant weights
                pl.BlockSpec((FEAT, OUTp), lambda i: (0, 0)),
                pl.BlockSpec((1, OUTp), lambda i: (0, 0)),
            ],
            out_specs=pl.BlockSpec((TB, OUTp), lambda i: (i, 0)),
        ),
        compiler_params=pltpu.CompilerParams(
            # >=2 steps per v7x TensorCore / >=4 total steps for v5e/v6e pipeline overlap
            dimension_semantics=("parallel",),
            vmem_limit_bytes=32 * 1024 * 1024,
        ),
    )(patches, w_conv_flat, w_lin_t, b_lin_row)

    # drop batch padding and the zero-padded output columns
    return out[:N, :OUT].astype(x_nchw.dtype)


# ---------------------------------------------------------------------------
# Pure-JAX f32 reference (same math) for a sanity check
# ---------------------------------------------------------------------------
def visual_embedding_ref(x_nchw, w_conv, b_conv, w_lin, b_lin, *, stride=2, pad=1):
    N = x_nchw.shape[0]
    y = jax.lax.conv_general_dilated(
        x_nchw, w_conv, window_strides=(stride, stride),
        padding=((pad, pad), (pad, pad)),
        dimension_numbers=("NCHW", "OIHW", "NCHW"))
    y = y + b_conv.reshape(1, -1, 1, 1)
    y = jnp.maximum(y, 0.0)
    feat = jnp.mean(y, axis=(2, 3)).reshape(N, -1)               # global avg pool + flatten
    act = jnp.where(feat > 0, feat, 0.01 * feat)                 # LeakyReLU
    return act @ w_lin.T + b_lin


if __name__ == "__main__":
    # small synthetic shapes consistent with the module's forward:
    # batch sized for 4 grid steps (TB=8), RGB input, 3x3 stem; FEAT/OUT are stand-ins
    # for GoogLeNet's 1024-d feature and out_size=512.
    N, C_in, H, W = 32, 3, 16, 16
    FEAT, OUT, K = 128, 64, 3

    key = jax.random.PRNGKey(0)
    kx, kwc, kbc, kwl, kbl = jax.random.split(key, 5)
    x = jax.random.normal(kx, (N, C_in, H, W), dtype=jnp.float32)
    w_conv = jax.random.normal(kwc, (FEAT, C_in, K, K), dtype=jnp.float32) * 0.1
    b_conv = jax.random.normal(kbc, (FEAT,), dtype=jnp.float32) * 0.1
    w_lin = jax.random.normal(kwl, (OUT, FEAT), dtype=jnp.float32) * 0.1
    b_lin = jax.random.normal(kbl, (OUT,), dtype=jnp.float32) * 0.1

    out = jax.block_until_ready(visual_embedding(x, w_conv, b_conv, w_lin, b_lin))
    ref = visual_embedding_ref(x, w_conv, b_conv, w_lin, b_lin)
    assert out.shape == (N, OUT), out.shape
    # bf16 conv GEMM operands (incl. folded bias), f32 accumulation and f32 head
    # -> relaxed tolerance vs the f32 reference
    err = float(jnp.max(jnp.abs(out - ref)))
    assert jnp.allclose(out, ref, atol=2e-2, rtol=2e-2), err
    print("KERNEL_OK")
</pallas_src>

<mosaic_0001>
module attributes {stable_mosaic.version = 11 : i64} {
  func.func @visual_embedding_kernel(%arg0: i32, %arg1: memref<512x32xbf16, #tpu.memory_space<vmem>>, %arg2: memref<32x128xbf16, #tpu.memory_space<vmem>>, %arg3: memref<128x128xf32, #tpu.memory_space<vmem>>, %arg4: memref<1x128xf32, #tpu.memory_space<vmem>>, %arg5: memref<8x128xf32, #tpu.memory_space<vmem>>) attributes {dimension_semantics = [#tpu.dimension_semantics<parallel>], iteration_bounds = array<i64: 4>, scalar_prefetch = 0 : i64, scratch_operands = 0 : i64, tpu.core_type = #tpu.core_type<tc>, window_params = [{transform_indices = @transform_0, window_bounds = array<i64: 512, 32>}, {pipeline_mode = #tpu.pipeline_mode<synchronous>, transform_indices = @transform_1, window_bounds = array<i64: 32, 128>}, {pipeline_mode = #tpu.pipeline_mode<synchronous>, transform_indices = @transform_2, window_bounds = array<i64: 128, 128>}, {pipeline_mode = #tpu.pipeline_mode<synchronous>, transform_indices = @transform_3, window_bounds = array<i64: 1, 128>}, {transform_indices = @transform_4, window_bounds = array<i64: 8, 128>}]} {
    %cst = arith.constant 0.000000e+00 : f32
    %0 = vector.broadcast %cst : f32 to vector<8x128xf32>
    %c0_i32 = arith.constant 0 : i32
    %c128_i32 = arith.constant 128 : i32
    %1 = arith.muli %c0_i32, %c128_i32 : i32
    %2 = tpu.assume_multiple %1, 128 : i32
    %3 = arith.index_cast %2 : i32 to index
    %c0 = arith.constant 0 : index
    %4 = vector.load %arg1[%3, %c0] : memref<512x32xbf16, #tpu.memory_space<vmem>>, vector<128x32xbf16>
    %c0_0 = arith.constant 0 : index
    %c0_1 = arith.constant 0 : index
    %5 = vector.load %arg2[%c0_0, %c0_1] : memref<32x128xbf16, #tpu.memory_space<vmem>>, vector<32x128xbf16>
    %cst_2 = arith.constant dense<0.000000e+00> : vector<128x128xf32>
    %6 = tpu.matmul %4, %5, %cst_2 {dimension_numbers = #tpu.dot_dimension_numbers<[1], [0], [0], [1], [0, 0, 1, 1], [], []>} : vector<128x32xbf16>, vector<32x128xbf16>, vector<128x128xf32> -> vector<128x128xf32>
    %cst_3 = arith.constant 0.000000e+00 : f32
    %7 = vector.broadcast %cst_3 : f32 to vector<128x128xf32>
    %8 = arith.maximumf %6, %7 : vector<128x128xf32>
    %9 = vector.shape_cast %8 : vector<128x128xf32> to vector<16x8x128xf32>
    %cst_4 = arith.constant dense<0.000000e+00> : vector<8x128xf32>
    %10 = vector.multi_reduction <add>, %9, %cst_4 [0] : vector<16x8x128xf32> to vector<8x128xf32>
    %11 = arith.addf %0, %10 : vector<8x128xf32>
    %c1_i32 = arith.constant 1 : i32
    %c128_i32_5 = arith.constant 128 : i32
    %12 = arith.muli %c1_i32, %c128_i32_5 : i32
    %13 = tpu.assume_multiple %12, 128 : i32
    %14 = arith.index_cast %13 : i32 to index
    %c0_6 = arith.constant 0 : index
    %15 = vector.load %arg1[%14, %c0_6] : memref<512x32xbf16, #tpu.memory_space<vmem>>, vector<128x32xbf16>
    %c0_7 = arith.constant 0 : index
    %c0_8 = arith.constant 0 : index
    %16 = vector.load %arg2[%c0_7, %c0_8] : memref<32x128xbf16, #tpu.memory_space<vmem>>, vector<32x128xbf16>
    %cst_9 = arith.constant dense<0.000000e+00> : vector<128x128xf32>
    %17 = tpu.matmul %15, %16, %cst_9 {dimension_numbers = #tpu.dot_dimension_numbers<[1], [0], [0], [1], [0, 0, 1, 1], [], []>} : vector<128x32xbf16>, vector<32x128xbf16>, vector<128x128xf32> -> vector<128x128xf32>
    %cst_10 = arith.constant 0.000000e+00 : f32
    %18 = vector.broadcast %cst_10 : f32 to vector<128x128xf32>
    %19 = arith.maximumf %17, %18 : vector<128x128xf32>
    %20 = vector.shape_cast %19 : vector<128x128xf32> to vector<16x8x128xf32>
    %cst_11 = arith.constant dense<0.000000e+00> : vector<8x128xf32>
    %21 = vector.multi_reduction <add>, %20, %cst_11 [0] : vector<16x8x128xf32> to vector<8x128xf32>
    %22 = arith.addf %11, %21 : vector<8x128xf32>
    %c2_i32 = arith.constant 2 : i32
    %c128_i32_12 = arith.constant 128 : i32
    %23 = arith.muli %c2_i32, %c128_i32_12 : i32
    %24 = tpu.assume_multiple %23, 128 : i32
    %25 = arith.index_cast %24 : i32 to index
    %c0_13 = arith.constant 0 : index
    %26 = vector.load %arg1[%25, %c0_13] : memref<512x32xbf16, #tpu.memory_space<vmem>>, vector<128x32xbf16>
    %c0_14 = arith.constant 0 : index
    %c0_15 = arith.constant 0 : index
    %27 = vector.load %arg2[%c0_14, %c0_15] : memref<32x128xbf16, #tpu.memory_space<vmem>>, vector<32x128xbf16>
    %cst_16 = arith.constant dense<0.000000e+00> : vector<128x128xf32>
    %28 = tpu.matmul %26, %27, %cst_16 {dimension_numbers = #tpu.dot_dimension_numbers<[1], [0], [0], [1], [0, 0, 1, 1], [], []>} : vector<128x32xbf16>, vector<32x128xbf16>, vector<128x128xf32> -> vector<128x128xf32>
    %cst_17 = arith.constant 0.000000e+00 : f32
    %29 = vector.broadcast %cst_17 : f32 to vector<128x128xf32>
    %30 = arith.maximumf %28, %29 : vector<128x128xf32>
    %31 = vector.shape_cast %30 : vector<128x128xf32> to vector<16x8x128xf32>
    %cst_18 = arith.constant dense<0.000000e+00> : vector<8x128xf32>
    %32 = vector.multi_reduction <add>, %31, %cst_18 [0] : vector<16x8x128xf32> to vector<8x128xf32>
    %33 = arith.addf %22, %32 : vector<8x128xf32>
    %c3_i32 = arith.constant 3 : i32
    %c128_i32_19 = arith.constant 128 : i32
    %34 = arith.muli %c3_i32, %c128_i32_19 : i32
    %35 = tpu.assume_multiple %34, 128 : i32
    %36 = arith.index_cast %35 : i32 to index
    %c0_20 = arith.constant 0 : index
    %37 = vector.load %arg1[%36, %c0_20] : memref<512x32xbf16, #tpu.memory_space<vmem>>, vector<128x32xbf16>
    %c0_21 = arith.constant 0 : index
    %c0_22 = arith.constant 0 : index
    %38 = vector.load %arg2[%c0_21, %c0_22] : memref<32x128xbf16, #tpu.memory_space<vmem>>, vector<32x128xbf16>
    %cst_23 = arith.constant dense<0.000000e+00> : vector<128x128xf32>
    %39 = tpu.matmul %37, %38, %cst_23 {dimension_numbers = #tpu.dot_dimension_numbers<[1], [0], [0], [1], [0, 0, 1, 1], [], []>} : vector<128x32xbf16>, vector<32x128xbf16>, vector<128x128xf32> -> vector<128x128xf32>
    %cst_24 = arith.constant 0.000000e+00 : f32
    %40 = vector.broadcast %cst_24 : f32 to vector<128x128xf32>
    %41 = arith.maximumf %39, %40 : vector<128x128xf32>
    %42 = vector.shape_cast %41 : vector<128x128xf32> to vector<16x8x128xf32>
    %cst_25 = arith.constant dense<0.000000e+00> : vector<8x128xf32>
    %43 = vector.multi_reduction <add>, %42, %cst_25 [0] : vector<16x8x128xf32> to vector<8x128xf32>
    %44 = arith.addf %33, %43 : vector<8x128xf32>
    %c4_i32 = arith.constant 4 : i32
    %cst_26 = arith.constant 1.562500e-02 : f32
    %45 = vector.broadcast %cst_26 : f32 to vector<8x128xf32>
    %46 = arith.mulf %44, %45 : vector<8x128xf32>
    %cst_27 = arith.constant 0.000000e+00 : f32
    %47 = vector.broadcast %cst_27 : f32 to vector<8x128xf32>
    %48 = arith.cmpf ogt, %46, %47 : vector<8x128xf32>
    %cst_28 = arith.constant 0.00999999977 : f32
    %49 = vector.broadcast %cst_28 : f32 to vector<8x128xf32>
    %50 = arith.mulf %49, %46 : vector<8x128xf32>
    %51 = arith.select %48, %46, %50 : vector<8x128xi1>, vector<8x128xf32>
    %c0_29 = arith.constant 0 : index
    %c0_30 = arith.constant 0 : index
    %52 = vector.load %arg3[%c0_29, %c0_30] : memref<128x128xf32, #tpu.memory_space<vmem>>, vector<128x128xf32>
    %cst_31 = arith.constant dense<0.000000e+00> : vector<8x128xf32>
    %53 = tpu.matmul %51, %52, %cst_31 {dimension_numbers = #tpu.dot_dimension_numbers<[1], [0], [0], [1], [0, 0, 1, 1], [], []>} : vector<8x128xf32>, vector<128x128xf32>, vector<8x128xf32> -> vector<8x128xf32>
    %c0_32 = arith.constant 0 : index
    %c0_33 = arith.constant 0 : index
    %54 = vector.load %arg4[%c0_32, %c0_33] : memref<1x128xf32, #tpu.memory_space<vmem>>, vector<1x128xf32>
    %55 = vector.broadcast %54 : vector<1x128xf32> to vector<8x128xf32>
    %56 = arith.addf %53, %55 : vector<8x128xf32>
    %c0_34 = arith.constant 0 : index
    %c0_35 = arith.constant 0 : index
    %57 = vector.load %arg5[%c0_34, %c0_35] : memref<8x128xf32, #tpu.memory_space<vmem>>, vector<8x128xf32>
    tpu.vector_store %arg5[%c0_34, %c0_35], %56 {strides = array<i32>} : memref<8x128xf32, #tpu.memory_space<vmem>>, vector<8x128xf32>,
    return
  }
  func.func @transform_0(%arg0: i32) -> (i32, i32) {
    %c0_i32 = arith.constant 0 : i32
    %c0_i32_0 = arith.constant 0 : i32
    return %arg0, %c0_i32 : i32, i32
  }
  func.func @transform_1(%arg0: i32) -> (i32, i32) {
    %c0_i32 = arith.constant 0 : i32
    %c0_i32_0 = arith.constant 0 : i32
    %c0_i32_1 = arith.constant 0 : i32
    return %c0_i32, %c0_i32_0 : i32, i32
  }
  func.func @transform_2(%arg0: i32) -> (i32, i32) {
    %c0_i32 = arith.constant 0 : i32
    %c0_i32_0 = arith.constant 0 : i32
    %c0_i32_1 = arith.constant 0 : i32
    return %c0_i32, %c0_i32_0 : i32, i32
  }
  func.func @transform_3(%arg0: i32) -> (i32, i32) {
    %c0_i32 = arith.constant 0 : i32
    %c0_i32_0 = arith.constant 0 : i32
    %c0_i32_1 = arith.constant 0 : i32
    return %c0_i32, %c0_i32_0 : i32, i32
  }
  func.func @transform_4(%arg0: i32) -> (i32, i32) {
    %c0_i32 = arith.constant 0 : i32
    %c0_i32_0 = arith.constant 0 : i32
    return %arg0, %c0_i32 : i32, i32
  }
}

</mosaic_0001>

<llo_original>
// kernel: tpu_custom_call.1
$region0: #{tpu_custom_call.1}
  #allocation0 [shape = 'u32[]', space=smem, size = 0x4, offset = 0x4, fixed_abs, tag = 'smem constant byte address 0x4 - core index']
  #allocation1 [shape = 'u32[144,128]{1,0:T(1,128)}', space=vmem, size = 0x12000, scoped, tag = 'internal scratch']
  %s0 = inlined_call_operand.vmem [shape: bf16[2048,32], index: 0, kind: input, shape index: {}]
  %s1 = inlined_call_operand.vmem [shape: bf16[32,128], index: 1, kind: input, shape index: {}]
  %s2 = inlined_call_operand.vmem [shape: f32[128,128], index: 2, kind: input, shape index: {}]
  %s3 = inlined_call_operand.vmem [shape: f32[1,128], index: 3, kind: input, shape index: {}]
  %s4 = inlined_call_operand.hbm [shape: f32[32,128], index: 4, kind: output, shape index: {}]
  %s5 = sld [smem:[#allocation0]]
  $region49: #{tpu_custom_call.1} parent=0
    _
  %s7 = ssub.s32 1, %s5
  %s8 = scalar_select 0, %s7, %s5
  $region1: #{tpu_custom_call.1} parent=0
    #allocation2 [shape = 'u8[8192]{0}', space=vmem, size = 0x2000, scoped, tag = 'output window, operand 0']
    #allocation3 [shape = 's32[2]{0}', space=sflag, size = 0x8, scoped, tag = 'scoped memory for tpu_custom_call.1']
    %9 = vsyncpa [#allocation3], 0
    %s10 = scalar_lea.sflag [#allocation3], 1
    %11 = vsyncpa %s10, 0
    loop: start=0, step=1, limit=6
    $region2: #{tpu_custom_call.1} parent=1 // loop_pre_header
      _
    $region3: #{tpu_custom_call.1} parent=1 // loop_header
      %s13 = sphi 0, %s17
      %p14 = scmp.ge.s32.totalorder %s13, 6
      %s23 = sphi 0, %s25
      %s26 = sphi 0, %s23
      %s27 = sphi 0, %s26
      %s43 = sphi 0, %s27
      %s47 = sphi 0, %s47
      %s49 = sphi 0, %s47
      %s50 = sphi 0, %s49
      %s64 = sphi 0, %s50
      %s68 = sphi 0, %s68
      %s70 = sphi 0, %s68
      %s71 = sphi 0, %s70
      %s85 = sphi 0, %s71
      %s89 = sphi 0, %s89
      %s91 = sphi 0, %s89
      %s92 = sphi 0, %s91
      %s106 = sphi 0, %s92
      %s112 = sphi 0, %s114
      %s115 = sphi 0, %s112
      %s116 = sphi 0, %s115
      %s132 = sphi 0, %s116
    $region4: #{tpu_custom_call.1} parent=1 // loop_header_branch
      %16 = sbr.rel (%p14) target = $region8
    $region5: #{tpu_custom_call.1} parent=1 // loop_body
      %s18 = ssub.s32 %s13, 1
      %s19 = ssub.s32 %s13, 2
      %s20 = sadd.s32 %s13, 1
      %s21 = ssub.s32 %s13, %s20
      %p22 = scmp.eq.s32.totalorder %s21, 0
      %s24 = sadd.s32 %s23, 1
      %s25 = scalar_select %p22, %s23, %s24
      %p28 = pneg %p22
      %p29 = scmp.eq.s32.totalorder %s13, 3
      %p30 = por %p28, %p29
      %p31 = scmp.ne.s32.totalorder %s23, %s26
      %p32 = scmp.eq.s32.totalorder %s13, 0
      %p33 = por %p31, %p32
      %p34 = scmp.ne.s32.totalorder %s23, %s26
      %p35 = scmp.eq.s32.totalorder %s18, 3
      %p36 = por %p34, %p35
      %p37 = scmp.ne.s32.totalorder %s26, %s27
      %p38 = scmp.eq.s32.totalorder %s18, 0
      %p39 = por %p37, %p38
      %p40 = scmp.ne.s32.totalorder %s26, %s27
      %p41 = scmp.eq.s32.totalorder %s19, 3
      %p42 = por %p40, %p41
      %p44 = scmp.ne.s32.totalorder %s27, %s43
      %p45 = scmp.eq.s32.totalorder %s19, 0
      %p46 = por %p44, %p45
      %s48 = sadd.s32 %s47, 1
      %p51 = scmp.eq.s32.totalorder %s13, 3
      %p52 = scmp.ne.s32.totalorder %s47, %s49
      %p53 = scmp.eq.s32.totalorder %s13, 0
      %p54 = por %p52, %p53
      %p55 = scmp.ne.s32.totalorder %s47, %s49
      %p56 = scmp.eq.s32.totalorder %s18, 3
      %p57 = por %p55, %p56
      %p58 = scmp.ne.s32.totalorder %s49, %s50
      %p59 = scmp.eq.s32.totalorder %s18, 0
      %p60 = por %p58, %p59
      %p61 = scmp.ne.s32.totalorder %s49, %s50
      %p62 = scmp.eq.s32.totalorder %s19, 3
      %p63 = por %p61, %p62
      %p65 = scmp.ne.s32.totalorder %s50, %s64
      %p66 = scmp.eq.s32.totalorder %s19, 0
      %p67 = por %p65, %p66
      %s69 = sadd.s32 %s68, 1
      %p72 = scmp.eq.s32.totalorder %s13, 3
      %p73 = scmp.ne.s32.totalorder %s68, %s70
      %p74 = scmp.eq.s32.totalorder %s13, 0
      %p75 = por %p73, %p74
      %p76 = scmp.ne.s32.totalorder %s68, %s70
      %p77 = scmp.eq.s32.totalorder %s18, 3
      %p78 = por %p76, %p77
      %p79 = scmp.ne.s32.totalorder %s70, %s71
      %p80 = scmp.eq.s32.totalorder %s18, 0
      %p81 = por %p79, %p80
      %p82 = scmp.ne.s32.totalorder %s70, %s71
      %p83 = scmp.eq.s32.totalorder %s19, 3
      %p84 = por %p82, %p83
      %p86 = scmp.ne.s32.totalorder %s71, %s85
      %p87 = scmp.eq.s32.totalorder %s19, 0
      %p88 = por %p86, %p87
      %s90 = sadd.s32 %s89, 1
      %p93 = scmp.eq.s32.totalorder %s13, 3
      %p94 = scmp.ne.s32.totalorder %s89, %s91
      %p95 = scmp.eq.s32.totalorder %s13, 0
      %p96 = por %p94, %p95
      %p97 = scmp.ne.s32.totalorder %s89, %s91
      %p98 = scmp.eq.s32.totalorder %s18, 3
      %p99 = por %p97, %p98
      %p100 = scmp.ne.s32.totalorder %s91, %s92
      %p101 = scmp.eq.s32.totalorder %s18, 0
      %p102 = por %p100, %p101
      %p103 = scmp.ne.s32.totalorder %s91, %s92
      %p104 = scmp.eq.s32.totalorder %s19, 3
      %p105 = por %p103, %p104
      %p107 = scmp.ne.s32.totalorder %s92, %s106
      %p108 = scmp.eq.s32.totalorder %s19, 0
      %p109 = por %p107, %p108
      %s110 = ssub.s32 %s13, %s20
      %p111 = scmp.eq.s32.totalorder %s110, 0
      %s113 = sadd.s32 %s112, 1
      %s114 = scalar_select %p111, %s112, %s113
      %p117 = pneg %p111
      %p118 = scmp.eq.s32.totalorder %s13, 3
      %p119 = por %p117, %p118
      %p120 = scmp.ne.s32.totalorder %s112, %s115
      %p121 = scmp.eq.s32.totalorder %s13, 0
      %p122 = por %p120, %p121
      %p123 = scmp.ne.s32.totalorder %s112, %s115
      %p124 = scmp.eq.s32.totalorder %s18, 3
      %p125 = por %p123, %p124
      %p126 = scmp.ne.s32.totalorder %s115, %s116
      %p127 = scmp.eq.s32.totalorder %s18, 0
      %p128 = por %p126, %p127
      %p129 = scmp.ne.s32.totalorder %s115, %s116
      %p130 = scmp.eq.s32.totalorder %s19, 3
      %p131 = por %p129, %p130
      %p133 = scmp.ne.s32.totalorder %s116, %s132
      %p134 = scmp.eq.s32.totalorder %s19, 0
      %p135 = por %p133, %p134
      %p136 = scmp.le.s32.totalorder 1, %s13
      %p137 = scmp.lt.s32.totalorder %s13, 5
      %p138 = pnand %p136, %p137
      %p139 = pneg %p138
      // Predicated region
      $region9: #{tpu_custom_call.1} parent=5 // pred_check
        _
      $region10: #{tpu_custom_call.1} parent=5 // pred_check_branch
        %141 = sbr.rel (%p138) target = $region12
      $region11: #{tpu_custom_call.1} parent=5 // pred_region
        %s142 = ssub.s32 %s13, 1
        // Predicated region
        $region13: #{tpu_custom_call.1} parent=11 // pred_check
          %p143 = pneg %p60
        $region14: #{tpu_custom_call.1} parent=11 // pred_check_branch
          %145 = sbr.rel (%p143) target = $region16
        $region15: #{tpu_custom_call.1} parent=11 // pred_region
          _
        $region16: #{tpu_custom_call.1} parent=11 // pred_fallthru
          _
        // Predicated region
        $region17: #{tpu_custom_call.1} parent=11 // pred_check
          %p146 = pneg %p81
        $region18: #{tpu_custom_call.1} parent=11 // pred_check_branch
          %148 = sbr.rel (%p146) target = $region20
        $region19: #{tpu_custom_call.1} parent=11 // pred_region
          _
        $region20: #{tpu_custom_call.1} parent=11 // pred_fallthru
          _
        // Predicated region
        $region21: #{tpu_custom_call.1} parent=11 // pred_check
          %p149 = pneg %p102
        $region22: #{tpu_custom_call.1} parent=11 // pred_check_branch
          %151 = sbr.rel (%p149) target = $region24
        $region23: #{tpu_custom_call.1} parent=11 // pred_region
          _
        $region24: #{tpu_custom_call.1} parent=11 // pred_fallthru
          _
      $region12: #{tpu_custom_call.1} parent=5 // pred_fallthru
        _
      %p152 = scmp.lt.s32.totalorder %s13, 4
      // Predicated region
      $region25: #{tpu_custom_call.1} parent=5 // pred_check
        %p153 = pneg %p152
      $region26: #{tpu_custom_call.1} parent=5 // pred_check_branch
        %155 = sbr.rel (%p153) target = $region28
      $region27: #{tpu_custom_call.1} parent=5 // pred_region
        // Predicated region
        $region29: #{tpu_custom_call.1} parent=27 // pred_check
          %p156 = pneg %p33
        $region30: #{tpu_custom_call.1} parent=27 // pred_check_branch
          %158 = sbr.rel (%p156) target = $region32
        $region31: #{tpu_custom_call.1} parent=27 // pred_region
          %s159 = smul.u32 64, %s13
          %p160 = scmp.lt.s32.totalorder %s159, 255
          %s161 = scalar_select %p160, %s159, 255
          %s162 = smul.addr %s161, 4
          %s163 = scalar_lea.vmem %s0, %s162
          %s164 = smul.u32 64, %s13
        $region32: #{tpu_custom_call.1} parent=27 // pred_fallthru
          _
      $region28: #{tpu_custom_call.1} parent=5 // pred_fallthru
        _
      %p165 = scmp.le.s32.totalorder 1, %s13
      %p166 = scmp.lt.s32.totalorder %s13, 5
      %p167 = pnand %p165, %p166
      %p168 = pneg %p167
      // Predicated region
      $region33: #{tpu_custom_call.1} parent=5 // pred_check
        _
      $region34: #{tpu_custom_call.1} parent=5 // pred_check_branch
        %170 = sbr.rel (%p167) target = $region36
      $region35: #{tpu_custom_call.1} parent=5 // pred_region
        %s171 = ssub.s32 %s13, 1
        %s172 = smul.u32 64, %s18
        %p173 = scmp.lt.s32.totalorder %s172, 255
        %s174 = scalar_select %p173, %s172, 255
        %s175 = smul.addr %s174, 4
        %s176 = scalar_lea.vmem %s0, %s175
        %p177 = pneg %p39
        %p178 = pneg %p36
        %p179 = pneg %p60
        %p180 = pneg %p57
        %p181 = pneg %p81
        %p182 = pneg %p78
        %p183 = pneg %p102
        %p184 = pneg %p99
        %p185 = pneg %p128
        %p186 = pneg %p125
        %s187 = sand.u32 %s115, 1
        %s188 = scalar_lea.sflag [#allocation3], %s187
        %s189 = sand.u32 %s115, 1
        %s190 = smul.addr %s189, 8
        %s191 = scalar_lea.vmem [#allocation2], %s190
        %s192 = smul.u32 64, %s18
        %p193 = scmp.lt.s32.totalorder %s192, 255
        %s194 = scalar_select %p193, %s192, 255
        %s195 = smul.addr %s194, 4
        %s196 = scalar_lea.vmem %s0, %s195
        %s197 = smul.u32 64, %s18
        %v199 = vld [vmem:[%s196] sm:$0xf]
        %v200 = vld [vmem:[%s196 + $0x4] sm:$0xf]
        %v201 = vld [vmem:[%s196 + $0x8] sm:$0xf]
        %v202 = vld [vmem:[%s196 + $0xc] sm:$0xf]
        %v203 = vld [vmem:[%s196 + $0x10] sm:$0xf]
        %v204 = vld [vmem:[%s196 + $0x14] sm:$0xf]
        %v205 = vld [vmem:[%s196 + $0x18] sm:$0xf]
        %v206 = vld [vmem:[%s196 + $0x1c] sm:$0xf]
        %v207 = vld [vmem:[%s196 + $0x20] sm:$0xf]
        %v208 = vld [vmem:[%s196 + $0x24] sm:$0xf]
        %v209 = vld [vmem:[%s196 + $0x28] sm:$0xf]
        %v210 = vld [vmem:[%s196 + $0x2c] sm:$0xf]
        %v211 = vld [vmem:[%s196 + $0x30] sm:$0xf]
        %v212 = vld [vmem:[%s196 + $0x34] sm:$0xf]
        %v213 = vld [vmem:[%s196 + $0x38] sm:$0xf]
        %v214 = vld [vmem:[%s196 + $0x3c] sm:$0xf]
        %v215 = vld [vmem:[%s1] sm:$0xf]
        %v216 = vld [vmem:[%s1 + $0x4] sm:$0xf]
        %v217 = vld [vmem:[%s1 + $0x8] sm:$0xf]
        %v218 = vld [vmem:[%s1 + $0xc] sm:$0xf]
        %v235 = vunpack.c.l.b16 %v199
        %v236 = vunpack.c.l.b16 %v200
        %v237 = vunpack.c.l.b16 %v201
        %v238 = vunpack.c.l.b16 %v202
        %v239 = vunpack.c.l.b16 %v203
        %v240 = vunpack.c.l.b16 %v204
        %v241 = vunpack.c.l.b16 %v205
        %v242 = vunpack.c.l.b16 %v206
        %v243 = vunpack.c.l.b16 %v207
        %v244 = vunpack.c.l.b16 %v208
        %v245 = vunpack.c.l.b16 %v209
        %v246 = vunpack.c.l.b16 %v210
        %v247 = vunpack.c.l.b16 %v211
        %v248 = vunpack.c.l.b16 %v212
        %v249 = vunpack.c.l.b16 %v213
        %v250 = vunpack.c.l.b16 %v214
        %v251 = vpack.c.b16 %v236, %v235
        %v252 = vpack.c.b16 %v238, %v237
        %v253 = vpack.c.b16 %v240, %v239
        %v254 = vpack.c.b16 %v242, %v241
        %v255 = vpack.c.b16 %v244, %v243
        %v256 = vpack.c.b16 %v246, %v245
        %v257 = vpack.c.b16 %v248, %v247
        %v258 = vpack.c.b16 %v250, %v249
        %v263 = vunpack.c.l.b16 %v215
        %v264 = vunpack.c.l.b16 %v216
        %v265 = vunpack.c.l.b16 %v217
        %v266 = vunpack.c.l.b16 %v218
        %v267 = vpack.c.b16 %v264, %v263
        %v268 = vpack.c.b16 %v266, %v265
        %vm271 = vcmask 261120
        %v273 = vsel %vm271, %v251, 0
        %v276 = vsel %vm271, %v252, 0
        %v279 = vsel %vm271, %v253, 0
        %v282 = vsel %vm271, %v254, 0
        %v285 = vsel %vm271, %v255, 0
        %v288 = vsel %vm271, %v256, 0
        %v291 = vsel %vm271, %v257, 0
        %v294 = vsel %vm271, %v258, 0
        %296 = vmatprep.subr.bf16.mxu0 0
        %297 = vmatpush1.bf16.msra.mxu0 %v267
        %298 = vmatprep.subr.bf16.mxu0 0
        %299 = vmatpush1.bf16.msra.mxu0 %v268
        %300 = vmatprep.subr.bf16.mxu0 0
        %301 = vmatpush1.bf16.msra.mxu0 0
        %302 = vmatprep.subr.bf16.mxu0 0
        %303 = vmatpush1.bf16.msra.mxu0 0
        %304 = vmatprep.subr.bf16.mxu0 0
        %305 = vmatpush1.bf16.msra.mxu0 0
        %306 = vmatprep.subr.bf16.mxu0 0
        %307 = vmatpush1.bf16.msra.mxu0 0
        %308 = vmatprep.subr.bf16.mxu0 0
        %309 = vmatpush1.bf16.msra.mxu0 0
        %310 = vmatprep.subr.bf16.mxu0 0
        %311 = vmatpush1.bf16.msra.mxu0 0
        %312 = vmatprep.subr.bf16.mxu0 0
        %313 = vmatpush1.bf16.msra.mxu0 0
        %314 = vmatprep.subr.bf16.mxu0 0
        %315 = vmatpush1.bf16.msra.mxu0 0
        %316 = vmatprep.subr.bf16.mxu0 0
        %317 = vmatpush1.bf16.msra.mxu0 0
        %318 = vmatprep.subr.bf16.mxu0 0
        %319 = vmatpush1.bf16.msra.mxu0 0
        %320 = vmatprep.subr.bf16.mxu0 0
        %321 = vmatpush1.bf16.msra.mxu0 0
        %322 = vmatprep.subr.bf16.mxu0 0
        %323 = vmatpush1.bf16.msra.mxu0 0
        %324 = vmatprep.subr.bf16.mxu0 0
        %325 = vmatpush1.bf16.msra.mxu0 0
        %326 = vmatprep.subr.bf16.mxu0 0
        %327 = vmatpush1.bf16.msra.mxu0 0
        %328 = vmatprep.mubr.bf16.mxu0 0
        %329 = vmatmul.mubr.bf16.gmra.mrb[0].mxu0 %v273
        %v330 = vpop.f32.mrb[0].mxu0
        %v331 = vadd.f32 0.0, %v330
        %v332 = vpop.f32.mrb[0].mxu0
        %v333 = vpop.f32.mrb[0].mxu0
        %v334 = vadd.f32 0.0, %v333
        %v335 = vpop.f32.mrb[0].mxu0
        %336 = vmatprep.mubr.bf16.mxu0 0
        %337 = vmatmul.mubr.bf16.gmra.mrb[0].mxu0 %v276
        %v338 = vpop.f32.mrb[0].mxu0
        %v339 = vadd.f32 0.0, %v338
        %v340 = vpop.f32.mrb[0].mxu0
        %v341 = vpop.f32.mrb[0].mxu0
        %v342 = vadd.f32 0.0, %v341
        %v343 = vpop.f32.mrb[0].mxu0
        %344 = vmatprep.mubr.bf16.mxu0 0
        %345 = vmatmul.mubr.bf16.gmra.mrb[0].mxu0 %v279
        %v346 = vpop.f32.mrb[0].mxu0
        %v347 = vadd.f32 0.0, %v346
        %v348 = vpop.f32.mrb[0].mxu0
        %v349 = vpop.f32.mrb[0].mxu0
        %v350 = vadd.f32 0.0, %v349
        %v351 = vpop.f32.mrb[0].mxu0
        %352 = vmatprep.mubr.bf16.mxu0 0
        %353 = vmatmul.mubr.bf16.gmra.mrb[0].mxu0 %v282
        %v354 = vpop.f32.mrb[0].mxu0
        %v355 = vadd.f32 0.0, %v354
        %v356 = vpop.f32.mrb[0].mxu0
        %v357 = vpop.f32.mrb[0].mxu0
        %v358 = vadd.f32 0.0, %v357
        %v359 = vpop.f32.mrb[0].mxu0
        %360 = vmatprep.mubr.bf16.mxu0 0
        %361 = vmatmul.mubr.bf16.gmra.mrb[0].mxu0 %v285
        %v362 = vpop.f32.mrb[0].mxu0
        %v363 = vadd.f32 0.0, %v362
        %v364 = vpop.f32.mrb[0].mxu0
        %v365 = vpop.f32.mrb[0].mxu0
        %v366 = vadd.f32 0.0, %v365
        %v367 = vpop.f32.mrb[0].mxu0
        %368 = vmatprep.mubr.bf16.mxu0 0
        %369 = vmatmul.mubr.bf16.gmra.mrb[0].mxu0 %v288
        %v370 = vpop.f32.mrb[0].mxu0
        %v371 = vadd.f32 0.0, %v370
        %v372 = vpop.f32.mrb[0].mxu0
        %v373 = vpop.f32.mrb[0].mxu0
        %v374 = vadd.f32 0.0, %v373
        %v375 = vpop.f32.mrb[0].mxu0
        %376 = vmatprep.mubr.bf16.mxu0 0
        %377 = vmatmul.mubr.bf16.gmra.mrb[0].mxu0 %v291
        %v378 = vpop.f32.mrb[0].mxu0
        %v379 = vadd.f32 0.0, %v378
        %v380 = vpop.f32.mrb[0].mxu0
        %v381 = vpop.f32.mrb[0].mxu0
        %v382 = vadd.f32 0.0, %v381
        %v383 = vpop.f32.mrb[0].mxu0
        %384 = vmatprep.mubr.bf16.mxu0 0
        %385 = vmatmul.mubr.bf16.gmra.mrb[0].mxu0 %v294
        %v386 = vpop.f32.mrb[0].mxu0
        %v387 = vadd.f32 0.0, %v386
        %v388 = vpop.f32.mrb[0].mxu0
        %v389 = vpop.f32.mrb[0].mxu0
        %v390 = vadd.f32 0.0, %v389
        %v391 = vpop.f32.mrb[0].mxu0
        %392 = vdwg.mxu0
        %v393 = vmax.f32 %v331, 0.0
        %v394 = vmax.f32 %v334, 0.0
        %v395 = vmax.f32 %v339, 0.0
        %v396 = vmax.f32 %v342, 0.0
        %v397 = vmax.f32 %v347, 0.0
        %v398 = vmax.f32 %v350, 0.0
        %v399 = vmax.f32 %v355, 0.0
        %v400 = vmax.f32 %v358, 0.0
        %v401 = vmax.f32 %v363, 0.0
        %v402 = vmax.f32 %v366, 0.0
        %v403 = vmax.f32 %v371, 0.0
        %v404 = vmax.f32 %v374, 0.0
        %v405 = vmax.f32 %v379, 0.0
        %v406 = vmax.f32 %v382, 0.0
        %v407 = vmax.f32 %v387, 0.0
        %v408 = vmax.f32 %v390, 0.0
        %v409 = vadd.f32 %v393, %v394
        %v410 = vadd.f32 %v409, %v395
        %v411 = vadd.f32 %v410, %v396
        %v412 = vadd.f32 %v411, %v397
        %v413 = vadd.f32 %v412, %v398
        %v414 = vadd.f32 %v413, %v399
        %v415 = vadd.f32 %v414, %v400
        %v416 = vadd.f32 %v415, %v401
        %v417 = vadd.f32 %v416, %v402
        %v418 = vadd.f32 %v417, %v403
        %v419 = vadd.f32 %v418, %v404
        %v420 = vadd.f32 %v419, %v405
        %v421 = vadd.f32 %v420, %v406
        %v422 = vadd.f32 %v421, %v407
        %v423 = vadd.f32 %v422, %v408
        %v424 = vadd.f32 %v423, 0.0
        %s425 = scalar_lea.vmem %s196, 64
        %v426 = vld [vmem:[%s425] sm:$0xf]
        %v427 = vld [vmem:[%s425 + $0x4] sm:$0xf]
        %v428 = vld [vmem:[%s425 + $0x8] sm:$0xf]
        %v429 = vld [vmem:[%s425 + $0xc] sm:$0xf]
        %v430 = vld [vmem:[%s425 + $0x10] sm:$0xf]
        %v431 = vld [vmem:[%s425 + $0x14] sm:$0xf]
        %v432 = vld [vmem:[%s425 + $0x18] sm:$0xf]
        %v433 = vld [vmem:[%s425 + $0x1c] sm:$0xf]
        %v434 = vld [vmem:[%s425 + $0x20] sm:$0xf]
        %v435 = vld [vmem:[%s425 + $0x24] sm:$0xf]
        %v436 = vld [vmem:[%s425 + $0x28] sm:$0xf]
        %v437 = vld [vmem:[%s425 + $0x2c] sm:$0xf]
        %v438 = vld [vmem:[%s425 + $0x30] sm:$0xf]
        %v439 = vld [vmem:[%s425 + $0x34] sm:$0xf]
        %v440 = vld [vmem:[%s425 + $0x38] sm:$0xf]
        %v441 = vld [vmem:[%s425 + $0x3c] sm:$0xf]
        %v458 = vunpack.c.l.b16 %v426
        %v459 = vunpack.c.l.b16 %v427
        %v460 = vunpack.c.l.b16 %v428
        %v461 = vunpack.c.l.b16 %v429
        %v462 = vunpack.c.l.b16 %v430
        %v463 = vunpack.c.l.b16 %v431
        %v464 = vunpack.c.l.b16 %v432
        %v465 = vunpack.c.l.b16 %v433
        %v466 = vunpack.c.l.b16 %v434
        %v467 = vunpack.c.l.b16 %v435
        %v468 = vunpack.c.l.b16 %v436
        %v469 = vunpack.c.l.b16 %v437
        %v470 = vunpack.c.l.b16 %v438
        %v471 = vunpack.c.l.b16 %v439
        %v472 = vunpack.c.l.b16 %v440
        %v473 = vunpack.c.l.b16 %v441
        %v474 = vpack.c.b16 %v459, %v458
        %v475 = vpack.c.b16 %v461, %v460
        %v476 = vpack.c.b16 %v463, %v462
        %v477 = vpack.c.b16 %v465, %v464
        %v478 = vpack.c.b16 %v467, %v466
        %v479 = vpack.c.b16 %v469, %v468
        %v480 = vpack.c.b16 %v471, %v470
        %v481 = vpack.c.b16 %v473, %v472
        %v483 = vsel %vm271, %v474, 0
        %v486 = vsel %vm271, %v475, 0
        %v489 = vsel %vm271, %v476, 0
        %v492 = vsel %vm271, %v477, 0
        %v495 = vsel %vm271, %v478, 0
        %v498 = vsel %vm271, %v479, 0
        %v501 = vsel %vm271, %v480, 0
        %v504 = vsel %vm271, %v481, 0
        %506 = vmatprep.subr.bf16.mxu0 0
        %507 = vmatpush1.bf16.msra.mxu0 %v267
        %508 = vmatprep.subr.bf16.mxu0 0
        %509 = vmatpush1.bf16.msra.mxu0 %v268
        %510 = vmatprep.subr.bf16.mxu0 0
        %511 = vmatpush1.bf16.msra.mxu0 0
        %512 = vmatprep.subr.bf16.mxu0 0
        %513 = vmatpush1.bf16.msra.mxu0 0
        %514 = vmatprep.subr.bf16.mxu0 0
        %515 = vmatpush1.bf16.msra.mxu0 0
        %516 = vmatprep.subr.bf16.mxu0 0
        %517 = vmatpush1.bf16.msra.mxu0 0
        %518 = vmatprep.subr.bf16.mxu0 0
        %519 = vmatpush1.bf16.msra.mxu0 0
        %520 = vmatprep.subr.bf16.mxu0 0
        %521 = vmatpush1.bf16.msra.mxu0 0
        %522 = vmatprep.subr.bf16.mxu0 0
        %523 = vmatpush1.bf16.msra.mxu0 0
        %524 = vmatprep.subr.bf16.mxu0 0
        %525 = vmatpush1.bf16.msra.mxu0 0
        %526 = vmatprep.subr.bf16.mxu0 0
        %527 = vmatpush1.bf16.msra.mxu0 0
        %528 = vmatprep.subr.bf16.mxu0 0
        %529 = vmatpush1.bf16.msra.mxu0 0
        %530 = vmatprep.subr.bf16.mxu0 0
        %531 = vmatpush1.bf16.msra.mxu0 0
        %532 = vmatprep.subr.bf16.mxu0 0
        %533 = vmatpush1.bf16.msra.mxu0 0
        %534 = vmatprep.subr.bf16.mxu0 0
        %535 = vmatpush1.bf16.msra.mxu0 0
        %536 = vmatprep.subr.bf16.mxu0 0
        %537 = vmatpush1.bf16.msra.mxu0 0
        %538 = vmatprep.mubr.bf16.mxu0 0
        %539 = vmatmul.mubr.bf16.gmra.mrb[0].mxu0 %v483
        %v540 = vpop.f32.mrb[0].mxu0
        %v541 = vadd.f32 0.0, %v540
        %v542 = vpop.f32.mrb[0].mxu0
        %v543 = vpop.f32.mrb[0].mxu0
        %v544 = vadd.f32 0.0, %v543
        %v545 = vpop.f32.mrb[0].mxu0
        %546 = vmatprep.mubr.bf16.mxu0 0
        %547 = vmatmul.mubr.bf16.gmra.mrb[0].mxu0 %v486
        %v548 = vpop.f32.mrb[0].mxu0
        %v549 = vadd.f32 0.0, %v548
        %v550 = vpop.f32.mrb[0].mxu0
        %v551 = vpop.f32.mrb[0].mxu0
        %v552 = vadd.f32 0.0, %v551
        %v553 = vpop.f32.mrb[0].mxu0
        %554 = vmatprep.mubr.bf16.mxu0 0
        %555 = vmatmul.mubr.bf16.gmra.mrb[0].mxu0 %v489
        %v556 = vpop.f32.mrb[0].mxu0
        %v557 = vadd.f32 0.0, %v556
        %v558 = vpop.f32.mrb[0].mxu0
        %v559 = vpop.f32.mrb[0].mxu0
        %v560 = vadd.f32 0.0, %v559
        %v561 = vpop.f32.mrb[0].mxu0
        %562 = vmatprep.mubr.bf16.mxu0 0
        %563 = vmatmul.mubr.bf16.gmra.mrb[0].mxu0 %v492
        %v564 = vpop.f32.mrb[0].mxu0
        %v565 = vadd.f32 0.0, %v564
        %v566 = vpop.f32.mrb[0].mxu0
        %v567 = vpop.f32.mrb[0].mxu0
        %v568 = vadd.f32 0.0, %v567
        %v569 = vpop.f32.mrb[0].mxu0
        %570 = vmatprep.mubr.bf16.mxu0 0
        %571 = vmatmul.mubr.bf16.gmra.mrb[0].mxu0 %v495
        %v572 = vpop.f32.mrb[0].mxu0
        %v573 = vadd.f32 0.0, %v572
        %v574 = vpop.f32.mrb[0].mxu0
        %v575 = vpop.f32.mrb[0].mxu0
        %v576 = vadd.f32 0.0, %v575
        %v577 = vpop.f32.mrb[0].mxu0
        %578 = vmatprep.mubr.bf16.mxu0 0
        %579 = vmatmul.mubr.bf16.gmra.mrb[0].mxu0 %v498
        %v580 = vpop.f32.mrb[0].mxu0
        %v581 = vadd.f32 0.0, %v580
        %v582 = vpop.f32.mrb[0].mxu0
        %v583 = vpop.f32.mrb[0].mxu0
        %v584 = vadd.f32 0.0, %v583
        %v585 = vpop.f32.mrb[0].mxu0
        %586 = vmatprep.mubr.bf16.mxu0 0
        %587 = vmatmul.mubr.bf16.gmra.mrb[0].mxu0 %v501
        %v588 = vpop.f32.mrb[0].mxu0
        %v589 = vadd.f32 0.0, %v588
        %v590 = vpop.f32.mrb[0].mxu0
        %v591 = vpop.f32.mrb[0].mxu0
        %v592 = vadd.f32 0.0, %v591
        %v593 = vpop.f32.mrb[0].mxu0
        %594 = vmatprep.mubr.bf16.mxu0 0
        %595 = vmatmul.mubr.bf16.gmra.mrb[0].mxu0 %v504
        %v596 = vpop.f32.mrb[0].mxu0
        %v597 = vadd.f32 0.0, %v596
        %v598 = vpop.f32.mrb[0].mxu0
        %v599 = vpop.f32.mrb[0].mxu0
        %v600 = vadd.f32 0.0, %v599
        %v601 = vpop.f32.mrb[0].mxu0
        %602 = vdwg.mxu0
        %v603 = vmax.f32 %v541, 0.0
        %v604 = vmax.f32 %v544, 0.0
        %v605 = vmax.f32 %v549, 0.0
        %v606 = vmax.f32 %v552, 0.0
        %v607 = vmax.f32 %v557, 0.0
        %v608 = vmax.f32 %v560, 0.0
        %v609 = vmax.f32 %v565, 0.0
        %v610 = vmax.f32 %v568, 0.0
        %v611 = vmax.f32 %v573, 0.0
        %v612 = vmax.f32 %v576, 0.0
        %v613 = vmax.f32 %v581, 0.0
        %v614 = vmax.f32 %v584, 0.0
        %v615 = vmax.f32 %v589, 0.0
        %v616 = vmax.f32 %v592, 0.0
        %v617 = vmax.f32 %v597, 0.0
        %v618 = vmax.f32 %v600, 0.0
        %v619 = vadd.f32 %v603, %v604
        %v620 = vadd.f32 %v619, %v605
        %v621 = vadd.f32 %v620, %v606
        %v622 = vadd.f32 %v621, %v607
        %v623 = vadd.f32 %v622, %v608
        %v624 = vadd.f32 %v623, %v609
        %v625 = vadd.f32 %v624, %v610
        %v626 = vadd.f32 %v625, %v611
        %v627 = vadd.f32 %v626, %v612
        %v628 = vadd.f32 %v627, %v613
        %v629 = vadd.f32 %v628, %v614
        %v630 = vadd.f32 %v629, %v615
        %v631 = vadd.f32 %v630, %v616
        %v632 = vadd.f32 %v631, %v617
        %v633 = vadd.f32 %v632, %v618
        %v634 = vadd.f32 %v424, %v633
        %s635 = scalar_lea.vmem %s196, 128
        %v636 = vld [vmem:[%s635] sm:$0xf]
        %v637 = vld [vmem:[%s635 + $0x4] sm:$0xf]
        %v638 = vld [vmem:[%s635 + $0x8] sm:$0xf]
        %v639 = vld [vmem:[%s635 + $0xc] sm:$0xf]
        %v640 = vld [vmem:[%s635 + $0x10] sm:$0xf]
        %v641 = vld [vmem:[%s635 + $0x14] sm:$0xf]
        %v642 = vld [vmem:[%s635 + $0x18] sm:$0xf]
        %v643 = vld [vmem:[%s635 + $0x1c] sm:$0xf]
        %v644 = vld [vmem:[%s635 + $0x20] sm:$0xf]
        %v645 = vld [vmem:[%s635 + $0x24] sm:$0xf]
        %v646 = vld [vmem:[%s635 + $0x28] sm:$0xf]
        %v647 = vld [vmem:[%s635 + $0x2c] sm:$0xf]
        %v648 = vld [vmem:[%s635 + $0x30] sm:$0xf]
        %v649 = vld [vmem:[%s635 + $0x34] sm:$0xf]
        %v650 = vld [vmem:[%s635 + $0x38] sm:$0xf]
        %v651 = vld [vmem:[%s635 + $0x3c] sm:$0xf]
        %v668 = vunpack.c.l.b16 %v636
        %v669 = vunpack.c.l.b16 %v637
        %v670 = vunpack.c.l.b16 %v638
        %v671 = vunpack.c.l.b16 %v639
        %v672 = vunpack.c.l.b16 %v640
        %v673 = vunpack.c.l.b16 %v641
        %v674 = vunpack.c.l.b16 %v642
        %v675 = vunpack.c.l.b16 %v643
        %v676 = vunpack.c.l.b16 %v644
        %v677 = vunpack.c.l.b16 %v645
        %v678 = vunpack.c.l.b16 %v646
        %v679 = vunpack.c.l.b16 %v647
        %v680 = vunpack.c.l.b16 %v648
        %v681 = vunpack.c.l.b16 %v649
        %v682 = vunpack.c.l.b16 %v650
        %v683 = vunpack.c.l.b16 %v651
        %v684 = vpack.c.b16 %v669, %v668
        %v685 = vpack.c.b16 %v671, %v670
        %v686 = vpack.c.b16 %v673, %v672
        %v687 = vpack.c.b16 %v675, %v674
        %v688 = vpack.c.b16 %v677, %v676
        %v689 = vpack.c.b16 %v679, %v678
        %v690 = vpack.c.b16 %v681, %v680
        %v691 = vpack.c.b16 %v683, %v682
        %v693 = vsel %vm271, %v684, 0
        %v696 = vsel %vm271, %v685, 0
        %v699 = vsel %vm271, %v686, 0
        %v702 = vsel %vm271, %v687, 0
        %v705 = vsel %vm271, %v688, 0
        %v708 = vsel %vm271, %v689, 0
        %v711 = vsel %vm271, %v690, 0
        %v714 = vsel %vm271, %v691, 0
        %716 = vmatprep.subr.bf16.mxu0 0
        %717 = vmatpush1.bf16.msra.mxu0 %v267
        %718 = vmatprep.subr.bf16.mxu0 0
        %719 = vmatpush1.bf16.msra.mxu0 %v268
        %720 = vmatprep.subr.bf16.mxu0 0
        %721 = vmatpush1.bf16.msra.mxu0 0
        %722 = vmatprep.subr.bf16.mxu0 0
        %723 = vmatpush1.bf16.msra.mxu0 0
        %724 = vmatprep.subr.bf16.mxu0 0
        %725 = vmatpush1.bf16.msra.mxu0 0
        %726 = vmatprep.subr.bf16.mxu0 0
        %727 = vmatpush1.bf16.msra.mxu0 0
        %728 = vmatprep.subr.bf16.mxu0 0
        %729 = vmatpush1.bf16.msra.mxu0 0
        %730 = vmatprep.subr.bf16.mxu0 0
        %731 = vmatpush1.bf16.msra.mxu0 0
        %732 = vmatprep.subr.bf16.mxu0 0
        %733 = vmatpush1.bf16.msra.mxu0 0
        %734 = vmatprep.subr.bf16.mxu0 0
        %735 = vmatpush1.bf16.msra.mxu0 0
        %736 = vmatprep.subr.bf16.mxu0 0
        %737 = vmatpush1.bf16.msra.mxu0 0
        %738 = vmatprep.subr.bf16.mxu0 0
        %739 = vmatpush1.bf16.msra.mxu0 0
        %740 = vmatprep.subr.bf16.mxu0 0
        %741 = vmatpush1.bf16.msra.mxu0 0
        %742 = vmatprep.subr.bf16.mxu0 0
        %743 = vmatpush1.bf16.msra.mxu0 0
        %744 = vmatprep.subr.bf16.mxu0 0
        %745 = vmatpush1.bf16.msra.mxu0 0
        %746 = vmatprep.subr.bf16.mxu0 0
        %747 = vmatpush1.bf16.msra.mxu0 0
        %748 = vmatprep.mubr.bf16.mxu0 0
        %749 = vmatmul.mubr.bf16.gmra.mrb[0].mxu0 %v693
        %v750 = vpop.f32.mrb[0].mxu0
        %v751 = vadd.f32 0.0, %v750
        %v752 = vpop.f32.mrb[0].mxu0
        %v753 = vpop.f32.mrb[0].mxu0
        %v754 = vadd.f32 0.0, %v753
        %v755 = vpop.f32.mrb[0].mxu0
        %756 = vmatprep.mubr.bf16.mxu0 0
        %757 = vmatmul.mubr.bf16.gmra.mrb[0].mxu0 %v696
        %v758 = vpop.f32.mrb[0].mxu0
        %v759 = vadd.f32 0.0, %v758
        %v760 = vpop.f32.mrb[0].mxu0
        %v761 = vpop.f32.mrb[0].mxu0
        %v762 = vadd.f32 0.0, %v761
        %v763 = vpop.f32.mrb[0].mxu0
        %764 = vmatprep.mubr.bf16.mxu0 0
        %765 = vmatmul.mubr.bf16.gmra.mrb[0].mxu0 %v699
        %v766 = vpop.f32.mrb[0].mxu0
        %v767 = vadd.f32 0.0, %v766
        %v768 = vpop.f32.mrb[0].mxu0
        %v769 = vpop.f32.mrb[0].mxu0
        %v770 = vadd.f32 0.0, %v769
        %v771 = vpop.f32.mrb[0].mxu0
        %772 = vmatprep.mubr.bf16.mxu0 0
        %773 = vmatmul.mubr.bf16.gmra.mrb[0].mxu0 %v702
        %v774 = vpop.f32.mrb[0].mxu0
        %v775 = vadd.f32 0.0, %v774
        %v776 = vpop.f32.mrb[0].mxu0
        %v777 = vpop.f32.mrb[0].mxu0
        %v778 = vadd.f32 0.0, %v777
        %v779 = vpop.f32.mrb[0].mxu0
        %780 = vmatprep.mubr.bf16.mxu0 0
        %781 = vmatmul.mubr.bf16.gmra.mrb[0].mxu0 %v705
        %v782 = vpop.f32.mrb[0].mxu0
        %v783 = vadd.f32 0.0, %v782
        %v784 = vpop.f32.mrb[0].mxu0
        %v785 = vpop.f32.mrb[0].mxu0
        %v786 = vadd.f32 0.0, %v785
        %v787 = vpop.f32.mrb[0].mxu0
        %788 = vmatprep.mubr.bf16.mxu0 0
        %789 = vmatmul.mubr.bf16.gmra.mrb[0].mxu0 %v708
        %v790 = vpop.f32.mrb[0].mxu0
        %v791 = vadd.f32 0.0, %v790
        %v792 = vpop.f32.mrb[0].mxu0
        %v793 = vpop.f32.mrb[0].mxu0
        %v794 = vadd.f32 0.0, %v793
        %v795 = vpop.f32.mrb[0].mxu0
        %796 = vmatprep.mubr.bf16.mxu0 0
        %797 = vmatmul.mubr.bf16.gmra.mrb[0].mxu0 %v711
        %v798 = vpop.f32.mrb[0].mxu0
        %v799 = vadd.f32 0.0, %v798
        %v800 = vpop.f32.mrb[0].mxu0
        %v801 = vpop.f32.mrb[0].mxu0
        %v802 = vadd.f32 0.0, %v801
        %v803 = vpop.f32.mrb[0].mxu0
        %804 = vmatprep.mubr.bf16.mxu0 0
        %805 = vmatmul.mubr.bf16.gmra.mrb[0].mxu0 %v714
        %v806 = vpop.f32.mrb[0].mxu0
        %v807 = vadd.f32 0.0, %v806
        %v808 = vpop.f32.mrb[0].mxu0
        %v809 = vpop.f32.mrb[0].mxu0
        %v810 = vadd.f32 0.0, %v809
        %v811 = vpop.f32.mrb[0].mxu0
        %812 = vdwg.mxu0
        %v813 = vmax.f32 %v751, 0.0
        %v814 = vmax.f32 %v754, 0.0
        %v815 = vmax.f32 %v759, 0.0
        %v816 = vmax.f32 %v762, 0.0
        %v817 = vmax.f32 %v767, 0.0
        %v818 = vmax.f32 %v770, 0.0
        %v819 = vmax.f32 %v775, 0.0
        %v820 = vmax.f32 %v778, 0.0
        %v821 = vmax.f32 %v783, 0.0
        %v822 = vmax.f32 %v786, 0.0
        %v823 = vmax.f32 %v791, 0.0
        %v824 = vmax.f32 %v794, 0.0
        %v825 = vmax.f32 %v799, 0.0
        %v826 = vmax.f32 %v802, 0.0
        %v827 = vmax.f32 %v807, 0.0
        %v828 = vmax.f32 %v810, 0.0
        %v829 = vadd.f32 %v813, %v814
        %v830 = vadd.f32 %v829, %v815
        %v831 = vadd.f32 %v830, %v816
        %v832 = vadd.f32 %v831, %v817
        %v833 = vadd.f32 %v832, %v818
        %v834 = vadd.f32 %v833, %v819
        %v835 = vadd.f32 %v834, %v820
        %v836 = vadd.f32 %v835, %v821
        %v837 = vadd.f32 %v836, %v822
        %v838 = vadd.f32 %v837, %v823
        %v839 = vadd.f32 %v838, %v824
        %v840 = vadd.f32 %v839, %v825
        %v841 = vadd.f32 %v840, %v826
        %v842 = vadd.f32 %v841, %v827
        %v843 = vadd.f32 %v842, %v828
        %v844 = vadd.f32 %v634, %v843
        %s845 = scalar_lea.vmem %s196, 192
        %v846 = vld [vmem:[%s845] sm:$0xf]
        %v847 = vld [vmem:[%s845 + $0x4] sm:$0xf]
        %v848 = vld [vmem:[%s845 + $0x8] sm:$0xf]
        %v849 = vld [vmem:[%s845 + $0xc] sm:$0xf]
        %v850 = vld [vmem:[%s845 + $0x10] sm:$0xf]
        %v851 = vld [vmem:[%s845 + $0x14] sm:$0xf]
        %v852 = vld [vmem:[%s845 + $0x18] sm:$0xf]
        %v853 = vld [vmem:[%s845 + $0x1c] sm:$0xf]
        %v854 = vld [vmem:[%s845 + $0x20] sm:$0xf]
        %v855 = vld [vmem:[%s845 + $0x24] sm:$0xf]
        %v856 = vld [vmem:[%s845 + $0x28] sm:$0xf]
        %v857 = vld [vmem:[%s845 + $0x2c] sm:$0xf]
        %v858 = vld [vmem:[%s845 + $0x30] sm:$0xf]
        %v859 = vld [vmem:[%s845 + $0x34] sm:$0xf]
        %v860 = vld [vmem:[%s845 + $0x38] sm:$0xf]
        %v861 = vld [vmem:[%s845 + $0x3c] sm:$0xf]
        %v878 = vunpack.c.l.b16 %v846
        %v879 = vunpack.c.l.b16 %v847
        %v880 = vunpack.c.l.b16 %v848
        %v881 = vunpack.c.l.b16 %v849
        %v882 = vunpack.c.l.b16 %v850
        %v883 = vunpack.c.l.b16 %v851
        %v884 = vunpack.c.l.b16 %v852
        %v885 = vunpack.c.l.b16 %v853
        %v886 = vunpack.c.l.b16 %v854
        %v887 = vunpack.c.l.b16 %v855
        %v888 = vunpack.c.l.b16 %v856
        %v889 = vunpack.c.l.b16 %v857
        %v890 = vunpack.c.l.b16 %v858
        %v891 = vunpack.c.l.b16 %v859
        %v892 = vunpack.c.l.b16 %v860
        %v893 = vunpack.c.l.b16 %v861
        %v894 = vpack.c.b16 %v879, %v878
        %v895 = vpack.c.b16 %v881, %v880
        %v896 = vpack.c.b16 %v883, %v882
        %v897 = vpack.c.b16 %v885, %v884
        %v898 = vpack.c.b16 %v887, %v886
        %v899 = vpack.c.b16 %v889, %v888
        %v900 = vpack.c.b16 %v891, %v890
        %v901 = vpack.c.b16 %v893, %v892
        %v903 = vsel %vm271, %v894, 0
        %v906 = vsel %vm271, %v895, 0
        %v909 = vsel %vm271, %v896, 0
        %v912 = vsel %vm271, %v897, 0
        %v915 = vsel %vm271, %v898, 0
        %v918 = vsel %vm271, %v899, 0
        %v921 = vsel %vm271, %v900, 0
        %v924 = vsel %vm271, %v901, 0
        %926 = vmatprep.subr.bf16.mxu0 0
        %927 = vmatpush1.bf16.msra.mxu0 %v267
        %928 = vmatprep.subr.bf16.mxu0 0
        %929 = vmatpush1.bf16.msra.mxu0 %v268
        %930 = vmatprep.subr.bf16.mxu0 0
        %931 = vmatpush1.bf16.msra.mxu0 0
        %932 = vmatprep.subr.bf16.mxu0 0
        %933 = vmatpush1.bf16.msra.mxu0 0
        %934 = vmatprep.subr.bf16.mxu0 0
        %935 = vmatpush1.bf16.msra.mxu0 0
        %936 = vmatprep.subr.bf16.mxu0 0
        %937 = vmatpush1.bf16.msra.mxu0 0
        %938 = vmatprep.subr.bf16.mxu0 0
        %939 = vmatpush1.bf16.msra.mxu0 0
        %940 = vmatprep.subr.bf16.mxu0 0
        %941 = vmatpush1.bf16.msra.mxu0 0
        %942 = vmatprep.subr.bf16.mxu0 0
        %943 = vmatpush1.bf16.msra.mxu0 0
        %944 = vmatprep.subr.bf16.mxu0 0
        %945 = vmatpush1.bf16.msra.mxu0 0
        %946 = vmatprep.subr.bf16.mxu0 0
        %947 = vmatpush1.bf16.msra.mxu0 0
        %948 = vmatprep.subr.bf16.mxu0 0
        %949 = vmatpush1.bf16.msra.mxu0 0
        %950 = vmatprep.subr.bf16.mxu0 0
        %951 = vmatpush1.bf16.msra.mxu0 0
        %952 = vmatprep.subr.bf16.mxu0 0
        %953 = vmatpush1.bf16.msra.mxu0 0
        %954 = vmatprep.subr.bf16.mxu0 0
        %955 = vmatpush1.bf16.msra.mxu0 0
        %956 = vmatprep.subr.bf16.mxu0 0
        %957 = vmatpush1.bf16.msra.mxu0 0
        %958 = vmatprep.mubr.bf16.mxu0 0
        %959 = vmatmul.mubr.bf16.gmra.mrb[0].mxu0 %v903
        %v960 = vpop.f32.mrb[0].mxu0
        %v961 = vadd.f32 0.0, %v960
        %v962 = vpop.f32.mrb[0].mxu0
        %v963 = vpop.f32.mrb[0].mxu0
        %v964 = vadd.f32 0.0, %v963
        %v965 = vpop.f32.mrb[0].mxu0
        %966 = vmatprep.mubr.bf16.mxu0 0
        %967 = vmatmul.mubr.bf16.gmra.mrb[0].mxu0 %v906
        %v968 = vpop.f32.mrb[0].mxu0
        %v969 = vadd.f32 0.0, %v968
        %v970 = vpop.f32.mrb[0].mxu0
        %v971 = vpop.f32.mrb[0].mxu0
        %v972 = vadd.f32 0.0, %v971
        %v973 = vpop.f32.mrb[0].mxu0
        %974 = vmatprep.mubr.bf16.mxu0 0
        %975 = vmatmul.mubr.bf16.gmra.mrb[0].mxu0 %v909
        %v976 = vpop.f32.mrb[0].mxu0
        %v977 = vadd.f32 0.0, %v976
        %v978 = vpop.f32.mrb[0].mxu0
        %v979 = vpop.f32.mrb[0].mxu0
        %v980 = vadd.f32 0.0, %v979
        %v981 = vpop.f32.mrb[0].mxu0
        %982 = vmatprep.mubr.bf16.mxu0 0
        %983 = vmatmul.mubr.bf16.gmra.mrb[0].mxu0 %v912
        %v984 = vpop.f32.mrb[0].mxu0
        %v985 = vadd.f32 0.0, %v984
        %v986 = vpop.f32.mrb[0].mxu0
        %v987 = vpop.f32.mrb[0].mxu0
        %v988 = vadd.f32 0.0, %v987
        %v989 = vpop.f32.mrb[0].mxu0
        %990 = vmatprep.mubr.bf16.mxu0 0
        %991 = vmatmul.mubr.bf16.gmra.mrb[0].mxu0 %v915
        %v992 = vpop.f32.mrb[0].mxu0
        %v993 = vadd.f32 0.0, %v992
        %v994 = vpop.f32.mrb[0].mxu0
        %v995 = vpop.f32.mrb[0].mxu0
        %v996 = vadd.f32 0.0, %v995
        %v997 = vpop.f32.mrb[0].mxu0
        %998 = vmatprep.mubr.bf16.mxu0 0
        %999 = vmatmul.mubr.bf16.gmra.mrb[0].mxu0 %v918
        %v1000 = vpop.f32.mrb[0].mxu0
        %v1001 = vadd.f32 0.0, %v1000
        %v1002 = vpop.f32.mrb[0].mxu0
        %v1003 = vpop.f32.mrb[0].mxu0
        %v1004 = vadd.f32 0.0, %v1003
        %v1005 = vpop.f32.mrb[0].mxu0
        %1006 = vmatprep.mubr.bf16.mxu0 0
        %1007 = vmatmul.mubr.bf16.gmra.mrb[0].mxu0 %v921
        %v1008 = vpop.f32.mrb[0].mxu0
        %v1009 = vadd.f32 0.0, %v1008
        %v1010 = vpop.f32.mrb[0].mxu0
        %v1011 = vpop.f32.mrb[0].mxu0
        %v1012 = vadd.f32 0.0, %v1011
        %v1013 = vpop.f32.mrb[0].mxu0
        %1014 = vmatprep.mubr.bf16.mxu0 0
        %1015 = vmatmul.mubr.bf16.gmra.mrb[0].mxu0 %v924
        %v1016 = vpop.f32.mrb[0].mxu0
        %v1017 = vadd.f32 0.0, %v1016
        %v1018 = vpop.f32.mrb[0].mxu0
        %v1019 = vpop.f32.mrb[0].mxu0
        %v1020 = vadd.f32 0.0, %v1019
        %v1021 = vpop.f32.mrb[0].mxu0
        %1022 = vdwg.mxu0
        %v1023 = vmax.f32 %v961, 0.0
        %v1024 = vmax.f32 %v964, 0.0
        %v1025 = vmax.f32 %v969, 0.0
        %v1026 = vmax.f32 %v972, 0.0
        %v1027 = vmax.f32 %v977, 0.0
        %v1028 = vmax.f32 %v980, 0.0
        %v1029 = vmax.f32 %v985, 0.0
        %v1030 = vmax.f32 %v988, 0.0
        %v1031 = vmax.f32 %v993, 0.0
        %v1032 = vmax.f32 %v996, 0.0
        %v1033 = vmax.f32 %v1001, 0.0
        %v1034 = vmax.f32 %v1004, 0.0
        %v1035 = vmax.f32 %v1009, 0.0
        %v1036 = vmax.f32 %v1012, 0.0
        %v1037 = vmax.f32 %v1017, 0.0
        %v1038 = vmax.f32 %v1020, 0.0
        %v1039 = vadd.f32 %v1023, %v1024
        %v1040 = vadd.f32 %v1039, %v1025
        %v1041 = vadd.f32 %v1040, %v1026
        %v1042 = vadd.f32 %v1041, %v1027
        %v1043 = vadd.f32 %v1042, %v1028
        %v1044 = vadd.f32 %v1043, %v1029
        %v1045 = vadd.f32 %v1044, %v1030
        %v1046 = vadd.f32 %v1045, %v1031
        %v1047 = vadd.f32 %v1046, %v1032
        %v1048 = vadd.f32 %v1047, %v1033
        %v1049 = vadd.f32 %v1048, %v1034
        %v1050 = vadd.f32 %v1049, %v1035
        %v1051 = vadd.f32 %v1050, %v1036
        %v1052 = vadd.f32 %v1051, %v1037
        %v1053 = vadd.f32 %v1052, %v1038
        %v1054 = vadd.f32 %v844, %v1053
        %v1055 = vmul.f32 %v1054, 0.015625
        %vm1056 = vcmp.gt.f32.partialorder %v1055, 0.0
        %v1057 = vmul.f32 %v1055, 0.01
        %v1058 = vsel %vm1056, %v1055, %v1057
        %v1059 = vld [vmem:[%s2] sm:$0xff]
        %v1060 = vld [vmem:[%s2 + $0x8] sm:$0xff]
        %v1061 = vld [vmem:[%s2 + $0x10] sm:$0xff]
        %v1062 = vld [vmem:[%s2 + $0x18] sm:$0xff]
        %v1063 = vld [vmem:[%s2 + $0x20] sm:$0xff]
        %v1064 = vld [vmem:[%s2 + $0x28] sm:$0xff]
        %v1065 = vld [vmem:[%s2 + $0x30] sm:$0xff]
        %v1066 = vld [vmem:[%s2 + $0x38] sm:$0xff]
        %v1067 = vld [vmem:[%s2 + $0x40] sm:$0xff]
        %v1068 = vld [vmem:[%s2 + $0x48] sm:$0xff]
        %v1069 = vld [vmem:[%s2 + $0x50] sm:$0xff]
        %v1070 = vld [vmem:[%s2 + $0x58] sm:$0xff]
        %v1071 = vld [vmem:[%s2 + $0x60] sm:$0xff]
        %v1072 = vld [vmem:[%s2 + $0x68] sm:$0xff]
        %v1073 = vld [vmem:[%s2 + $0x70] sm:$0xff]
        %v1074 = vld [vmem:[%s2 + $0x78] sm:$0xff]
        %v1075 = vld [vmem:[%s3] sm:$0x1]
        %v1077 = vlaneseq
        %v1078 = vshrl.u32 %v1077, 7
        %v1079 = vsub.s32 0, %v1078
        %v1080 = vrot.slane %v1075, %v1079
        %1082 = vmatprep.subr.mxu0 0.0
        %1083 = vmatpush1.msra.mxu0 %v1059
        %1084 = vmatprep.subr.mxu0 0.0
        %1085 = vmatpush1.msra.mxu0 %v1060
        %1086 = vmatprep.subr.mxu0 0.0
        %1087 = vmatpush1.msra.mxu0 %v1061
        %1088 = vmatprep.subr.mxu0 0.0
        %1089 = vmatpush1.msra.mxu0 %v1062
        %1090 = vmatprep.subr.mxu0 0.0
        %1091 = vmatpush1.msra.mxu0 %v1063
        %1092 = vmatprep.subr.mxu0 0.0
        %1093 = vmatpush1.msra.mxu0 %v1064
        %1094 = vmatprep.subr.mxu0 0.0
        %1095 = vmatpush1.msra.mxu0 %v1065
        %1096 = vmatprep.subr.mxu0 0.0
        %1097 = vmatpush1.msra.mxu0 %v1066
        %1098 = vmatprep.subr.mxu0 0.0
        %1099 = vmatpush1.msra.mxu0 %v1067
        %1100 = vmatprep.subr.mxu0 0.0
        %1101 = vmatpush1.msra.mxu0 %v1068
        %1102 = vmatprep.subr.mxu0 0.0
        %1103 = vmatpush1.msra.mxu0 %v1069
        %1104 = vmatprep.subr.mxu0 0.0
        %1105 = vmatpush1.msra.mxu0 %v1070
        %1106 = vmatprep.subr.mxu0 0.0
        %1107 = vmatpush1.msra.mxu0 %v1071
        %1108 = vmatprep.subr.mxu0 0.0
        %1109 = vmatpush1.msra.mxu0 %v1072
        %1110 = vmatprep.subr.mxu0 0.0
        %1111 = vmatpush1.msra.mxu0 %v1073
        %1112 = vmatprep.subr.mxu0 0.0
        %1113 = vmatpush1.msra.mxu0 %v1074
        %1114 = vmatprep.subr.mxu0 0.0
        %1115 = vmatpush1.msra.mxu0 0.0
        %1116 = vmatprep.subr.mxu0 0.0
        %1117 = vmatpush1.msra.mxu0 0.0
        %1118 = vmatprep.subr.mxu0 0.0
        %1119 = vmatpush1.msra.mxu0 0.0
        %1120 = vmatprep.subr.mxu0 0.0
        %1121 = vmatpush1.msra.mxu0 0.0
        %1122 = vmatprep.subr.mxu0 0.0
        %1123 = vmatpush1.msra.mxu0 0.0
        %1124 = vmatprep.subr.mxu0 0.0
        %1125 = vmatpush1.msra.mxu0 0.0
        %1126 = vmatprep.subr.mxu0 0.0
        %1127 = vmatpush1.msra.mxu0 0.0
        %1128 = vmatprep.subr.mxu0 0.0
        %1129 = vmatpush1.msra.mxu0 0.0
        %1130 = vmatprep.subr.mxu0 0.0
        %1131 = vmatpush1.msra.mxu0 0.0
        %1132 = vmatprep.subr.mxu0 0.0
        %1133 = vmatpush1.msra.mxu0 0.0
        %1134 = vmatprep.subr.mxu0 0.0
        %1135 = vmatpush1.msra.mxu0 0.0
        %1136 = vmatprep.subr.mxu0 0.0
        %1137 = vmatpush1.msra.mxu0 0.0
        %1138 = vmatprep.subr.mxu0 0.0
        %1139 = vmatpush1.msra.mxu0 0.0
        %1140 = vmatprep.subr.mxu0 0.0
        %1141 = vmatpush1.msra.mxu0 0.0
        %1142 = vmatprep.subr.mxu0 0.0
        %1143 = vmatpush1.msra.mxu0 0.0
        %1144 = vmatprep.subr.mxu0 0.0
        %1145 = vmatpush1.msra.mxu0 0.0
        %1146 = vmatprep.mubr.f32.mxu0 0.0
        %1147 = vmatmul.mubr.f32.gmra.mrb[0].mxu0 %v1058
        %v1148 = vpop.f32.mrb[0].mxu0
        %v1149 = vadd.f32 %v1080, %v1148
        %v1150 = vpop.f32.mrb[0].mxu0
        %1151 = vdwg.mxu0
        %1152 = vst [vmem:[%s191] sm:$0xff] %v1149
        %s1153 = sand.u32 %s115, 1
        %s1154 = scalar_lea.sflag [#allocation3], %s1153
        %s1155 = sand.u32 %s115, 1
        %s1156 = smul.addr %s1155, 8
        %s1157 = scalar_lea.vmem [#allocation2], %s1156
        // Predicated region
        $region37: #{tpu_custom_call.1} parent=35 // pred_check
          %p1158 = pneg %p125
        $region38: #{tpu_custom_call.1} parent=35 // pred_check_branch
          %1160 = sbr.rel (%p1158) target = $region40
        $region39: #{tpu_custom_call.1} parent=35 // pred_region
          %s1162 = ssub.s32 128, 128
          %1163 = vsyncadd %s1154, %s1162
          %s1164 = smul.addr %s18, 128
          %s1165 = scalar_lea.hbm %s4, %s1164
          %s1167 = sshll.u32 %s1157, 4
          %s1168 = int_to_ptr.vmem [resolvable:$true] %s1167
          %1170 = dma.vmem_to_hbm [thread:$0]  %s1168, 128, %s1165, %s1154
        $region40: #{tpu_custom_call.1} parent=35 // pred_fallthru
          _
      $region36: #{tpu_custom_call.1} parent=5 // pred_fallthru
        _
      %p1171 = scmp.le.s32.totalorder 2, %s13
      // Predicated region
      $region41: #{tpu_custom_call.1} parent=5 // pred_check
        %p1172 = pneg %p1171
      $region42: #{tpu_custom_call.1} parent=5 // pred_check_branch
        %1174 = sbr.rel (%p1172) target = $region44
      $region43: #{tpu_custom_call.1} parent=5 // pred_region
        %s1175 = ssub.s32 %s13, 2
        // Predicated region
        $region45: #{tpu_custom_call.1} parent=43 // pred_check
          %p1176 = pneg %p131
        $region46: #{tpu_custom_call.1} parent=43 // pred_check_branch
          %1178 = sbr.rel (%p1176) target = $region48
        $region47: #{tpu_custom_call.1} parent=43 // pred_region
          %s1179 = sand.u32 %s116, 1
          %s1180 = scalar_lea.sflag [#allocation3], %s1179
          %s1181 = sand.u32 %s116, 1
          %s1182 = smul.addr %s1181, 8
          %s1183 = scalar_lea.vmem [#allocation2], %s1182
          %1184 = dma.done %s1180, 128
        $region48: #{tpu_custom_call.1} parent=43 // pred_fallthru
          _
      $region44: #{tpu_custom_call.1} parent=5 // pred_fallthru
        _
    $region6: #{tpu_custom_call.1} parent=1 // loop_footer
      %s17 = sadd.s32 1, %s13
    $region7: #{tpu_custom_call.1} parent=1 // loop_footer_branch
      %12 = sbr.rel target = $region3
    $region8: #{tpu_custom_call.1} parent=1 // loop_exit
      _
    %1185 = vsyncpa [#allocation3], 1
    %s1186 = scalar_lea.sflag [#allocation3], 1
    %1187 = vsyncpa %s1186, 1

</llo_original>
